<compile_context>
chip_gen: v6e
topology: v6e:2x2x1
jax: 0.10.0
libtpu: 0.0.40
codegen_flags: <defaults>
</compile_context>

<pallas_src>
import math
from functools import partial

import jax
import jax.numpy as jnp
from jax import lax
from jax.experimental import pallas as pl
from jax.experimental.pallas import tpu as pltpu


def _round_up(x, m):
    return ((x + m - 1) // m) * m


# ---------------------------------------------------------------------------
# Fast path: small vocab, VMEM-resident table, one-hot MXU gather (exact).
# ---------------------------------------------------------------------------
def _small_vocab_embed_kernel(tok_ref, emb_ref, out_ref, *, scale, vocab):
    tm = tok_ref.shape[0]
    tok = tok_ref[...]                                           # (tm, 1) int32
    ids = lax.broadcasted_iota(jnp.int32, (tm, vocab), 1)        # (tm, V)
    onehot = (tok == ids).astype(jnp.bfloat16)                   # exact 0/1

    # 3-term bf16 split of the table: a single-pass bf16 MXU matmul would
    # truncate table values; t1+t2+t3 recovers them to ~2^-24 relative error.
    tbl = emb_ref[...].astype(jnp.float32)
    t1 = tbl.astype(jnp.bfloat16)
    r1 = tbl - t1.astype(jnp.float32)
    t2 = r1.astype(jnp.bfloat16)
    r2 = r1 - t2.astype(jnp.float32)
    t3 = r2.astype(jnp.bfloat16)

    acc = jnp.dot(onehot, t1, preferred_element_type=jnp.float32)
    acc = acc + jnp.dot(onehot, t2, preferred_element_type=jnp.float32)
    acc = acc + jnp.dot(onehot, t3, preferred_element_type=jnp.float32)
    out_ref[...] = (acc * scale).astype(out_ref.dtype)


def _embed_small_vocab(tok_flat, emb_table, scale, max_tile_rows):
    (M,) = tok_flat.shape
    V, D = emb_table.shape

    tm = min(_round_up(max(max_tile_rows, 8), 8), _round_up(M, 8))
    m_pad = _round_up(M, tm)
    if m_pad != M:  # pad with token 0 (valid row); sliced off by the caller
        tok_flat = jnp.concatenate([tok_flat, jnp.zeros((m_pad - M,), jnp.int32)])
    tok_col = tok_flat.reshape(m_pad, 1)

    return pl.pallas_call(
        partial(_small_vocab_embed_kernel, scale=scale, vocab=V),
        out_shape=jax.ShapeDtypeStruct((m_pad, D), emb_table.dtype),
        grid_spec=pltpu.PrefetchScalarGridSpec(
            num_scalar_prefetch=0,
            grid=(m_pad // tm,),
            in_specs=[
                pl.BlockSpec((tm, 1), lambda i: (i, 0)),   # token ids
                pl.BlockSpec((V, D), lambda i: (0, 0)),    # VMEM-resident table
            ],
            out_specs=pl.BlockSpec((tm, D), lambda i: (i, 0)),
        ),
        # No carried state across grid steps -> safe to shard on v7x megacore.
        compiler_params=pltpu.CompilerParams(dimension_semantics=("parallel",)),
    )(tok_col, emb_table)


# ---------------------------------------------------------------------------
# General path: HBM-resident table, double-buffered per-row DMA gather.
# ---------------------------------------------------------------------------
def _gather_embed_kernel(tok_ref, emb_hbm, out_ref, buf, sems, *, scale, tm, k, d):
    # tok_ref : SMEM (m_pad,) int32 (scalar prefetch)
    # emb_hbm : (V, D) table left in HBM (memory_space=pl.ANY)
    # out_ref : VMEM output block (tm // k, k * d)   [lane-dense when k > 1]
    # buf     : VMEM scratch (2, tm // k, k * d)     [double buffer]
    # sems    : DMA semaphores (2,)                  [one per slot]
    s = pl.program_id(0)
    j = pl.program_id(1)
    n_inner = pl.num_programs(1)
    t = s * n_inner + j                      # global tile index
    rows_out = tm // k

    def issue(tile, slot):
        base = tile * tm

        def body(r, carry):
            for c in range(k):               # static; k in {1, 2, 4, ..., 16}
                tok = tok_ref[base + r * k + c]
                pltpu.make_async_copy(
                    emb_hbm.at[pl.ds(tok, 1), :],
                    buf.at[slot].at[pl.ds(r, 1), pl.ds(c * d, d)],
                    sems.at[slot],           # all copies share the slot's sem
                ).start()
            return carry

        lax.fori_loop(0, rows_out, body, 0, unroll=min(8, rows_out))

    # Prime the pipeline on the first step of this slice (each "parallel"
    # slice may run on a different TensorCore, so prime per slice).
    @pl.when(j == 0)
    def _():
        issue(t, t % 2)

    # Issue next tile's gathers into the other slot BEFORE waiting on this one.
    @pl.when(j + 1 < n_inner)
    def _():
        issue(t + 1, (t + 1) % 2)

    slot = t % 2
    # Single wait: the descriptor's dst is the whole tile, so it drains the
    # accumulated byte count of all tm row copies signalled on this semaphore.
    pltpu.make_async_copy(buf.at[slot], buf.at[slot], sems.at[slot]).wait()

    out_ref[...] = (buf[slot] * scale).astype(out_ref.dtype)


def _embed_hbm_gather(tok_flat, emb_table, scale, max_tile_rows):
    (M,) = tok_flat.shape
    V, D = emb_table.shape
    itemsize = emb_table.dtype.itemsize

    # Lane-dense output packing (feedback #7): pack k rows per 128-lane out row.
    if D < 128 and 128 % D == 0 and itemsize == 4:
        k = 128 // D
    else:
        k = 1
    row_align = 8 * k                       # out block rows must be multiple of 8

    # Tile sizing (feedback #5): VMEM ~= 2*tm*D (gather buf) + 2*tm*D (pipelined
    # output block); keep <= ~24 MiB so it fits v7x's 64 MiB physical VMEM with
    # headroom, and raise the scoped limit explicitly (v5e default is 16 MiB).
    budget = 24 * 1024 * 1024
    tm_cap = max(row_align, (budget // (4 * D * itemsize)) // row_align * row_align)
    tm = min(max_tile_rows, tm_cap, _round_up(M, row_align))
    tm = max(row_align, (tm // row_align) * row_align)
    m_pad = _round_up(M, tm)

    if m_pad != M:  # pad with token 0 (valid row); sliced off by the caller
        tok_flat = jnp.concatenate([tok_flat, jnp.zeros((m_pad - M,), jnp.int32)])

    tiles = m_pad // tm
    n_slices = 2 if (tiles >= 2 and tiles % 2 == 0) else 1   # v7x: 2 TCs
    n_inner = tiles // n_slices

    rows_out = tm // k
    dp = k * D

    vmem_needed = 4 * tm * D * itemsize
    vmem_limit = int(min(48 * 1024 * 1024,
                         max(16 * 1024 * 1024, vmem_needed + (4 << 20))))

    # NOTE: token ids are scalar-prefetched into SMEM; for extremely large B*S
    # they would need to be chunked across multiple pallas_calls.
    out = pl.pallas_call(
        partial(_gather_embed_kernel, scale=scale, tm=tm, k=k, d=D),
        out_shape=jax.ShapeDtypeStruct((m_pad // k, dp), emb_table.dtype),
        grid_spec=pltpu.PrefetchScalarGridSpec(
            num_scalar_prefetch=1,                          # token ids -> SMEM
            grid=(n_slices, n_inner),
            in_specs=[pl.BlockSpec(memory_space=pl.ANY)],   # table stays in HBM
            out_specs=pl.BlockSpec(
                (rows_out, dp),
                lambda s, j, tok: (s * n_inner + j, 0)),
            scratch_shapes=[
                pltpu.VMEM((2, rows_out, dp), emb_table.dtype),  # double buffer
                pltpu.SemaphoreType.DMA((2,)),                   # one sem / slot
            ],
        ),
        compiler_params=pltpu.CompilerParams(
            dimension_semantics=("parallel", "arbitrary"),
            vmem_limit_bytes=vmem_limit),
    )(tok_flat, emb_table)

    # (m_pad//k, k*D) -> (m_pad, D): packed rows hold k consecutive tokens.
    return out.reshape(m_pad, D)


# ---------------------------------------------------------------------------
# Public wrapper: out[..., :] = emb_table[tokens[...], :] * sqrt(n_units)
# ---------------------------------------------------------------------------
def word_embedding_pallas(tokens, emb_table, n_units=None, *,
                          max_tile_rows=256, force_hbm_gather=False):
    V, D = emb_table.shape
    if n_units is None:
        n_units = D
    assert D == n_units

    lead_shape = tokens.shape
    M = int(math.prod(lead_shape))
    tok_flat = tokens.reshape((M,)).astype(jnp.int32)
    scale = math.sqrt(float(n_units))
    itemsize = emb_table.dtype.itemsize

    small_table = (V <= 1024) and (V * D * itemsize <= 512 * 1024)
    if small_table and not force_hbm_gather:
        out2d = _embed_small_vocab(tok_flat, emb_table, scale, max_tile_rows)
    else:
        out2d = _embed_hbm_gather(tok_flat, emb_table, scale, max_tile_rows)

    return out2d[:M].reshape(lead_shape + (D,))


if __name__ == "__main__":
    key = jax.random.PRNGKey(0)

    # --- Test 1: spec-like shapes (batch=2, seq=8, vocab=64, n_units=32).
    # Small table -> VMEM-resident one-hot fast path.
    B, S, VOCAB, N_UNITS = 2, 8, 64, 32
    k_emb, k_tok, key = jax.random.split(key, 3)
    emb = jax.random.normal(k_emb, (VOCAB, N_UNITS), jnp.float32)   # ~nn.Embedding init
    tok = jax.random.randint(k_tok, (B, S), 0, VOCAB, dtype=jnp.int32)
    out = jax.block_until_ready(word_embedding_pallas(tok, emb, N_UNITS))
    ref = emb[tok] * math.sqrt(N_UNITS)
    assert out.shape == (B, S, N_UNITS)
    assert bool(jnp.all(jnp.isfinite(out)))
    assert bool(jnp.allclose(out, ref, atol=1e-4, rtol=1e-5))

    # --- Test 2: HBM gather path, lane-packed output (D=32 -> k=4), even tile
    # count -> two "parallel" slices; exercises the double-buffered DMA pipeline.
    B2, S2, V2, D2 = 2, 56, 512, 32
    k_emb, k_tok, key = jax.random.split(key, 3)
    emb2 = jax.random.normal(k_emb, (V2, D2), jnp.float32)
    tok2 = jax.random.randint(k_tok, (B2, S2), 0, V2, dtype=jnp.int32)
    out2 = jax.block_until_ready(
        word_embedding_pallas(tok2, emb2, D2, max_tile_rows=32,
                              force_hbm_gather=True))
    ref2 = emb2[tok2] * math.sqrt(D2)
    assert bool(jnp.allclose(out2, ref2, atol=1e-5, rtol=1e-5))

    # --- Test 3: HBM gather path, D=128 (k=1), odd tile count -> single slice,
    # multi-step slot wraparound of the double buffer.
    B3, S3, V3, D3 = 2, 20, 300, 128
    k_emb, k_tok, key = jax.random.split(key, 3)
    emb3 = jax.random.normal(k_emb, (V3, D3), jnp.float32)
    tok3 = jax.random.randint(k_tok, (B3, S3), 0, V3, dtype=jnp.int32)
    out3 = jax.block_until_ready(
        word_embedding_pallas(tok3, emb3, D3, max_tile_rows=8,
                              force_hbm_gather=True))
    ref3 = emb3[tok3] * math.sqrt(D3)
    assert bool(jnp.allclose(out3, ref3, atol=1e-5, rtol=1e-5))

    print("KERNEL_OK")
</pallas_src>

<mosaic_0001>
module attributes {stable_mosaic.version = 11 : i64} {
  func.func @_small_vocab_embed_kernel(%arg0: i32, %arg1: memref<16x1xi32, #tpu.memory_space<vmem>>, %arg2: memref<64x32xf32, #tpu.memory_space<vmem>>, %arg3: memref<16x32xf32, #tpu.memory_space<vmem>>) attributes {dimension_semantics = [#tpu.dimension_semantics<parallel>], iteration_bounds = array<i64: 1>, scalar_prefetch = 0 : i64, scratch_operands = 0 : i64, tpu.core_type = #tpu.core_type<tc>, window_params = [{transform_indices = @transform_0, window_bounds = array<i64: 16, 1>}, {pipeline_mode = #tpu.pipeline_mode<synchronous>, transform_indices = @transform_1, window_bounds = array<i64: 64, 32>}, {transform_indices = @transform_2, window_bounds = array<i64: 16, 32>}]} {
    %c0 = arith.constant 0 : index
    %c0_0 = arith.constant 0 : index
    %0 = vector.load %arg1[%c0, %c0_0] : memref<16x1xi32, #tpu.memory_space<vmem>>, vector<16x1xi32>
    %1 = tpu.iota {dimensions = array<i32: 1>} : vector<16x64xi32>
    %2 = vector.broadcast %0 : vector<16x1xi32> to vector<16x64xi32>
    %3 = arith.cmpi eq, %2, %1 : vector<16x64xi32>
    %4 = arith.extui %3 : vector<16x64xi1> to vector<16x64xi32>
    %5 = arith.sitofp %4 : vector<16x64xi32> to vector<16x64xf32>
    %6 = arith.truncf %5 : vector<16x64xf32> to vector<16x64xbf16>
    %c0_1 = arith.constant 0 : index
    %c0_2 = arith.constant 0 : index
    %7 = vector.load %arg2[%c0_1, %c0_2] : memref<64x32xf32, #tpu.memory_space<vmem>>, vector<64x32xf32>
    %8 = arith.truncf %7 : vector<64x32xf32> to vector<64x32xbf16>
    %9 = arith.extf %8 : vector<64x32xbf16> to vector<64x32xf32>
    %10 = arith.subf %7, %9 : vector<64x32xf32>
    %11 = arith.truncf %10 : vector<64x32xf32> to vector<64x32xbf16>
    %12 = arith.extf %11 : vector<64x32xbf16> to vector<64x32xf32>
    %13 = arith.subf %10, %12 : vector<64x32xf32>
    %14 = arith.truncf %13 : vector<64x32xf32> to vector<64x32xbf16>
    %cst = arith.constant dense<0.000000e+00> : vector<16x32xf32>
    %15 = tpu.matmul %6, %8, %cst {dimension_numbers = #tpu.dot_dimension_numbers<[1], [0], [0], [1], [0, 0, 1, 1], [], []>} : vector<16x64xbf16>, vector<64x32xbf16>, vector<16x32xf32> -> vector<16x32xf32>
    %cst_3 = arith.constant dense<0.000000e+00> : vector<16x32xf32>
    %16 = tpu.matmul %6, %11, %cst_3 {dimension_numbers = #tpu.dot_dimension_numbers<[1], [0], [0], [1], [0, 0, 1, 1], [], []>} : vector<16x64xbf16>, vector<64x32xbf16>, vector<16x32xf32> -> vector<16x32xf32>
    %17 = arith.addf %15, %16 : vector<16x32xf32>
    %cst_4 = arith.constant dense<0.000000e+00> : vector<16x32xf32>
    %18 = tpu.matmul %6, %14, %cst_4 {dimension_numbers = #tpu.dot_dimension_numbers<[1], [0], [0], [1], [0, 0, 1, 1], [], []>} : vector<16x64xbf16>, vector<64x32xbf16>, vector<16x32xf32> -> vector<16x32xf32>
    %19 = arith.addf %17, %18 : vector<16x32xf32>
    %cst_5 = arith.constant 5.65685415 : f32
    %20 = vector.broadcast %cst_5 : f32 to vector<16x32xf32>
    %21 = arith.mulf %19, %20 : vector<16x32xf32>
    %c0_6 = arith.constant 0 : index
    %c0_7 = arith.constant 0 : index
    %22 = vector.load %arg3[%c0_6, %c0_7] : memref<16x32xf32, #tpu.memory_space<vmem>>, vector<16x32xf32>
    tpu.vector_store %arg3[%c0_6, %c0_7], %21 {strides = array<i32>} : memref<16x32xf32, #tpu.memory_space<vmem>>, vector<16x32xf32>,
    return
  }
  func.func @transform_0(%arg0: i32) -> (i32, i32) {
    %c0_i32 = arith.constant 0 : i32
    %c0_i32_0 = arith.constant 0 : i32
    return %arg0, %c0_i32 : i32, i32
  }
  func.func @transform_1(%arg0: i32) -> (i32, i32) {
    %c0_i32 = arith.constant 0 : i32
    %c0_i32_0 = arith.constant 0 : i32
    %c0_i32_1 = arith.constant 0 : i32
    return %c0_i32, %c0_i32_0 : i32, i32
  }
  func.func @transform_2(%arg0: i32) -> (i32, i32) {
    %c0_i32 = arith.constant 0 : i32
    %c0_i32_0 = arith.constant 0 : i32
    return %arg0, %c0_i32 : i32, i32
  }
}

</mosaic_0001>

<llo_original>
// kernel: tpu_custom_call.1
$region0: #{tpu_custom_call.1}
  #allocation0 [shape = 'u32[]', space=smem, size = 0x4, offset = 0x4, fixed_abs, tag = 'smem constant byte address 0x4 - core index']
  #allocation1 [shape = 'u32[144,128]{1,0:T(1,128)}', space=vmem, size = 0x12000, scoped, tag = 'internal scratch']
  %s0 = inlined_call_operand.vmem [shape: s32[16,1], index: 0, kind: input, shape index: {}]
  %s1 = inlined_call_operand.vmem [shape: f32[64,32], index: 1, kind: input, shape index: {}]
  %s2 = inlined_call_operand.hbm [shape: f32[16,32], index: 2, kind: output, shape index: {}]
  %s3 = sld [smem:[#allocation0]]
  $region18: #{tpu_custom_call.1} parent=0
    _
  %s5 = ssub.s32 1, %s3
  %s6 = scalar_select 0, %s5, %s3
  $region1: #{tpu_custom_call.1} parent=0
    #allocation2 [shape = 'u8[8192]{0}', space=vmem, size = 0x2000, scoped, tag = 'output window, operand 0, single buffered']
    #allocation3 [shape = 's32[1]{0}', space=sflag, size = 0x4, scoped, tag = 'scoped memory for tpu_custom_call.1']
    %7 = vsyncpa [#allocation3], 0
    // Predicated region
    $region2: #{tpu_custom_call.1} parent=1 // pred_check
      _
    $region3: #{tpu_custom_call.1} parent=1 // pred_check_branch
      %9 = sbr.rel (0) target = $region5
    $region4: #{tpu_custom_call.1} parent=1 // pred_region
      _
    $region5: #{tpu_custom_call.1} parent=1 // pred_fallthru
      _
    // Predicated region
    $region6: #{tpu_custom_call.1} parent=1 // pred_check
      _
    $region7: #{tpu_custom_call.1} parent=1 // pred_check_branch
      %11 = sbr.rel (0) target = $region9
    $region8: #{tpu_custom_call.1} parent=1 // pred_region
      _
    $region9: #{tpu_custom_call.1} parent=1 // pred_fallthru
      _
    %v13 = vld [vmem:[%s0] sm:$0xff]
    %v14 = vld [vmem:[%s0 + $0x8] sm:$0xff]
    %v15 = vlaneseq
    %v16 = vand.u32 %v15, 127
    %17 = vset.pattern.permute.xlu0 0
    %18 = vperm.xlu0 %17, %v13
    %v19 = vpop.permute.xlu0 %18
    %20 = vset.pattern.permute.xlu0 0
    %21 = vperm.xlu0 %20, %v14
    %v22 = vpop.permute.xlu0 %21
    %vm23 = vcmp.eq.s32.totalorder %v19, %v16
    %vm24 = vcmp.eq.s32.totalorder %v22, %v16
    %v25 = vsel %vm23, 1, 0
    %v26 = vsel %vm24, 1, 0
    %v27 = vcvt.s32.f32 %v25
    %v28 = vcvt.s32.f32 %v26
    %v29 = vpack.c.bf16 %v28, %v27
    %v30 = vld [vmem:[%s1] sm:$0xff]
    %v31 = vld [vmem:[%s1 + $0x8] sm:$0xff]
    %v32 = vld [vmem:[%s1 + $0x10] sm:$0xff]
    %v33 = vld [vmem:[%s1 + $0x18] sm:$0xff]
    %v34 = vld [vmem:[%s1 + $0x20] sm:$0xff]
    %v35 = vld [vmem:[%s1 + $0x28] sm:$0xff]
    %v36 = vld [vmem:[%s1 + $0x30] sm:$0xff]
    %v37 = vld [vmem:[%s1 + $0x38] sm:$0xff]
    %v38 = vpack.c.bf16 %v31, %v30
    %v39 = vpack.c.bf16 %v33, %v32
    %v40 = vpack.c.bf16 %v35, %v34
    %v41 = vpack.c.bf16 %v37, %v36
    %v42 = vunpack.c.l.bf16 %v38
    %v43 = vunpack.c.h.bf16 %v38
    %v44 = vunpack.c.l.bf16 %v39
    %v45 = vunpack.c.h.bf16 %v39
    %v46 = vunpack.c.l.bf16 %v40
    %v47 = vunpack.c.h.bf16 %v40
    %v48 = vunpack.c.l.bf16 %v41
    %v49 = vunpack.c.h.bf16 %v41
    %v50 = vsub.f32 %v30, %v42
    %v51 = vsub.f32 %v31, %v43
    %v52 = vsub.f32 %v32, %v44
    %v53 = vsub.f32 %v33, %v45
    %v54 = vsub.f32 %v34, %v46
    %v55 = vsub.f32 %v35, %v47
    %v56 = vsub.f32 %v36, %v48
    %v57 = vsub.f32 %v37, %v49
    %v58 = vpack.c.bf16 %v51, %v50
    %v59 = vpack.c.bf16 %v53, %v52
    %v60 = vpack.c.bf16 %v55, %v54
    %v61 = vpack.c.bf16 %v57, %v56
    %v62 = vunpack.c.l.bf16 %v58
    %v63 = vunpack.c.h.bf16 %v58
    %v64 = vunpack.c.l.bf16 %v59
    %v65 = vunpack.c.h.bf16 %v59
    %v66 = vunpack.c.l.bf16 %v60
    %v67 = vunpack.c.h.bf16 %v60
    %v68 = vunpack.c.l.bf16 %v61
    %v69 = vunpack.c.h.bf16 %v61
    %v70 = vsub.f32 %v50, %v62
    %v71 = vsub.f32 %v51, %v63
    %v72 = vsub.f32 %v52, %v64
    %v73 = vsub.f32 %v53, %v65
    %v74 = vsub.f32 %v54, %v66
    %v75 = vsub.f32 %v55, %v67
    %v76 = vsub.f32 %v56, %v68
    %v77 = vsub.f32 %v57, %v69
    %v78 = vpack.c.bf16 %v71, %v70
    %v79 = vpack.c.bf16 %v73, %v72
    %v80 = vpack.c.bf16 %v75, %v74
    %v81 = vpack.c.bf16 %v77, %v76
    %vm82 = vcmask 523264
    %v84 = vsel %vm82, %v29, 0
    %86 = vmatprep.subr.bf16.mxu0 0
    %87 = vmatpush1.bf16.msra.mxu0 0
    %88 = vmatprep.subr.bf16.mxu0 0
    %89 = vmatpush1.bf16.msra.mxu0 0
    %90 = vmatprep.subr.bf16.mxu0 0
    %91 = vmatpush1.bf16.msra.mxu0 0
    %92 = vmatprep.subr.bf16.mxu0 0
    %93 = vmatpush1.bf16.msra.mxu0 0
    %94 = vmatprep.subr.bf16.mxu0 0
    %95 = vmatpush1.bf16.msra.mxu0 %v61
    %96 = vmatprep.subr.bf16.mxu0 0
    %97 = vmatpush1.bf16.msra.mxu0 %v60
    %98 = vmatprep.subr.bf16.mxu0 0
    %99 = vmatpush1.bf16.msra.mxu0 %v59
    %100 = vmatprep.subr.bf16.mxu0 0
    %101 = vmatpush1.bf16.msra.mxu0 %v58
    %102 = vmatprep.subr.bf16.mxu0 0
    %103 = vmatpush2.bf16.msra.mxu0 0
    %104 = vmatprep.subr.bf16.mxu0 0
    %105 = vmatpush2.bf16.msra.mxu0 0
    %106 = vmatprep.subr.bf16.mxu0 0
    %107 = vmatpush2.bf16.msra.mxu0 0
    %108 = vmatprep.subr.bf16.mxu0 0
    %109 = vmatpush2.bf16.msra.mxu0 0
    %110 = vmatprep.subr.bf16.mxu0 0
    %111 = vmatpush2.bf16.msra.mxu0 0
    %112 = vmatprep.subr.bf16.mxu0 0
    %113 = vmatpush2.bf16.msra.mxu0 0
    %114 = vmatprep.subr.bf16.mxu0 0
    %115 = vmatpush2.bf16.msra.mxu0 0
    %116 = vmatprep.subr.bf16.mxu0 0
    %117 = vmatpush2.bf16.msra.mxu0 0
    %118 = vmatprep.mubr.bf16.mxu0 0
    %119 = vmatmul.mubr.bf16.gmra.mxu0 %v84
    %v120 = vpop.f32.mrf.mxu0
    %v121 = vadd.f32 0.0, %v120
    %v122 = vpop.f32.mrf.mxu0
    %v123 = vpop.f32.mrf.mxu0
    %v124 = vadd.f32 0.0, %v123
    %v125 = vpop.f32.mrf.mxu0
    %126 = vdwg.mxu0
    %127 = vmatprep.subr.bf16.mxu0 0
    %128 = vmatpush1.bf16.msra.mxu0 0
    %129 = vmatprep.subr.bf16.mxu0 0
    %130 = vmatpush1.bf16.msra.mxu0 0
    %131 = vmatprep.subr.bf16.mxu0 0
    %132 = vmatpush1.bf16.msra.mxu0 0
    %133 = vmatprep.subr.bf16.mxu0 0
    %134 = vmatpush1.bf16.msra.mxu0 0
    %135 = vmatprep.subr.bf16.mxu0 0
    %136 = vmatpush1.bf16.msra.mxu0 %v41
    %137 = vmatprep.subr.bf16.mxu0 0
    %138 = vmatpush1.bf16.msra.mxu0 %v40
    %139 = vmatprep.subr.bf16.mxu0 0
    %140 = vmatpush1.bf16.msra.mxu0 %v39
    %141 = vmatprep.subr.bf16.mxu0 0
    %142 = vmatpush1.bf16.msra.mxu0 %v38
    %143 = vmatprep.subr.bf16.mxu0 0
    %144 = vmatpush2.bf16.msra.mxu0 0
    %145 = vmatprep.subr.bf16.mxu0 0
    %146 = vmatpush2.bf16.msra.mxu0 0
    %147 = vmatprep.subr.bf16.mxu0 0
    %148 = vmatpush2.bf16.msra.mxu0 0
    %149 = vmatprep.subr.bf16.mxu0 0
    %150 = vmatpush2.bf16.msra.mxu0 0
    %151 = vmatprep.subr.bf16.mxu0 0
    %152 = vmatpush2.bf16.msra.mxu0 0
    %153 = vmatprep.subr.bf16.mxu0 0
    %154 = vmatpush2.bf16.msra.mxu0 0
    %155 = vmatprep.subr.bf16.mxu0 0
    %156 = vmatpush2.bf16.msra.mxu0 0
    %157 = vmatprep.subr.bf16.mxu0 0
    %158 = vmatpush2.bf16.msra.mxu0 0
    %159 = vmatprep.mubr.bf16.mxu0 0
    %160 = vmatmul.mubr.bf16.gmra.mxu0 %v84
    %v161 = vpop.f32.mrf.mxu0
    %v162 = vadd.f32 %v121, %v161
    %v163 = vpop.f32.mrf.mxu0
    %v164 = vpop.f32.mrf.mxu0
    %v165 = vadd.f32 %v124, %v164
    %v166 = vpop.f32.mrf.mxu0
    %167 = vdwg.mxu0
    %168 = vmatprep.subr.bf16.mxu0 0
    %169 = vmatpush1.bf16.msra.mxu0 0
    %170 = vmatprep.subr.bf16.mxu0 0
    %171 = vmatpush1.bf16.msra.mxu0 0
    %172 = vmatprep.subr.bf16.mxu0 0
    %173 = vmatpush1.bf16.msra.mxu0 0
    %174 = vmatprep.subr.bf16.mxu0 0
    %175 = vmatpush1.bf16.msra.mxu0 0
    %176 = vmatprep.subr.bf16.mxu0 0
    %177 = vmatpush1.bf16.msra.mxu0 %v81
    %178 = vmatprep.subr.bf16.mxu0 0
    %179 = vmatpush1.bf16.msra.mxu0 %v80
    %180 = vmatprep.subr.bf16.mxu0 0
    %181 = vmatpush1.bf16.msra.mxu0 %v79
    %182 = vmatprep.subr.bf16.mxu0 0
    %183 = vmatpush1.bf16.msra.mxu0 %v78
    %184 = vmatprep.subr.bf16.mxu0 0
    %185 = vmatpush2.bf16.msra.mxu0 0
    %186 = vmatprep.subr.bf16.mxu0 0
    %187 = vmatpush2.bf16.msra.mxu0 0
    %188 = vmatprep.subr.bf16.mxu0 0
    %189 = vmatpush2.bf16.msra.mxu0 0
    %190 = vmatprep.subr.bf16.mxu0 0
    %191 = vmatpush2.bf16.msra.mxu0 0
    %192 = vmatprep.subr.bf16.mxu0 0
    %193 = vmatpush2.bf16.msra.mxu0 0
    %194 = vmatprep.subr.bf16.mxu0 0
    %195 = vmatpush2.bf16.msra.mxu0 0
    %196 = vmatprep.subr.bf16.mxu0 0
    %197 = vmatpush2.bf16.msra.mxu0 0
    %198 = vmatprep.subr.bf16.mxu0 0
    %199 = vmatpush2.bf16.msra.mxu0 0
    %200 = vmatprep.mubr.bf16.mxu0 0
    %201 = vmatmul.mubr.bf16.gmra.mxu0 %v84
    %v202 = vpop.f32.mrf.mxu0
    %v203 = vadd.f32 0.0, %v202
    %v204 = vpop.f32.mrf.mxu0
    %v205 = vpop.f32.mrf.mxu0
    %v206 = vadd.f32 0.0, %v205
    %v207 = vpop.f32.mrf.mxu0
    %208 = vdwg.mxu0
    %v209 = vadd.f32 %v162, %v203
    %v210 = vadd.f32 %v165, %v206
    %v211 = vmul.f32 %v209, 5.656854
    %v212 = vmul.f32 %v210, 5.656854
    %vm213 = vcmask 261120
    %214 = vst.msk [vmem:[#allocation2] sm:$0xff] %vm213, %v211
    %215 = vst.msk [vmem:[#allocation2 + $0x8] sm:$0xff] %vm213, %v212
    // Predicated region
    $region10: #{tpu_custom_call.1} parent=1 // pred_check
      _
    $region11: #{tpu_custom_call.1} parent=1 // pred_check_branch
      %217 = sbr.rel (0) target = $region13
    $region12: #{tpu_custom_call.1} parent=1 // pred_region
      %s219 = ssub.s32 256, 256
      %220 = vsyncadd [#allocation3], %s219
      %s221 = sshll.u32 [#allocation2], 4
      %s222 = int_to_ptr.vmem [resolvable:$true] %s221
      %227 = dma.vmem_to_hbm [thread:$0]  %s222, 256, %s2, [#allocation3], 128, 128, 8
    $region13: #{tpu_custom_call.1} parent=1 // pred_fallthru
      _
    // Predicated region
    $region14: #{tpu_custom_call.1} parent=1 // pred_check
      _
    $region15: #{tpu_custom_call.1} parent=1 // pred_check_branch
      %229 = sbr.rel (0) target = $region17
    $region16: #{tpu_custom_call.1} parent=1 // pred_region
      %230 = dma.done [#allocation3], 256
    $region17: #{tpu_custom_call.1} parent=1 // pred_fallthru
      _
    %231 = vsyncpa [#allocation3], 1

</llo_original>
